<compile_context>
chip_gen: v6e
topology: v6e:2x2x1
jax: 0.10.0
libtpu: 0.0.40
codegen_flags: <defaults>
</compile_context>

<pallas_src>
import functools

import jax
import jax.numpy as jnp
from jax.experimental import pallas as pl
from jax.experimental.pallas import tpu as pltpu

NUM_ITERS = 3  # KPLayer.num


def kp_kernel(z_ref, pz_ref, gram_ref, ainv_ref, ztl_ref,
              rec_ref, preds_ref, *, pred_len):
    """One grid step processes a (Bb,) slab of the batch.

    z_ref    : (Bb, T, E)           input snapshots (native dtype, MXU operand)
    pz_ref   : (Bb, P, E)           snapshots to roll forward
    gram_ref : (Bb, E, E) float32   z^T z
    ainv_ref : (Bb, E, E) float32   (z^T z + ridge)^-1
    ztl_ref  : (Bb, E, E) float32   z^T label
    rec_ref  : (Bb, T, E)           sum_i z @ K_i
    preds_ref: (Bb, pred_len, P, E) rollout chunks (each chunk a full block)
    """
    gram = gram_ref[...]
    ainv = ainv_ref[...]
    ztl = ztl_ref[...]

    # --- 3-step DMD refinement purely on (E, E) quantities. -----------------
    # K_i = (z^T z)^-1 z^T label_i,   label_{i+1} = label_i - z K_i
    #   =>  ztl_{i+1} = ztl_i - gram @ K_i.
    # rec_sum / pred_sum are linear in K, so only Ksum is accumulated here and
    # the big T*E^2 / P*E^2 matmuls are applied once after the loop.
    K = jnp.zeros_like(ainv)
    Ksum = jnp.zeros_like(ainv)
    for it in range(NUM_ITERS):
        K = jnp.einsum('bef,bfg->beg', ainv, ztl,
                       preferred_element_type=jnp.float32)
        Ksum = Ksum + K
        if it + 1 < NUM_ITERS:
            ztl = ztl - jnp.einsum('bef,bfg->beg', gram, K,
                                   preferred_element_type=jnp.float32)

    # rec_sum = z @ (K_1 + K_2 + K_3): one matmul instead of three.
    rec = jnp.einsum('bte,bef->btf', z_ref[...], Ksum,
                     preferred_element_type=jnp.float32)
    rec_ref[...] = rec.astype(rec_ref.dtype)

    # pred_sum = pred_z @ Ksum, then autoregressive rollout with the final K.
    pred_sum = jnp.einsum('bpe,bef->bpf', pz_ref[...], Ksum,
                          preferred_element_type=jnp.float32)
    preds_ref[:, 0:1, :, :] = jnp.expand_dims(pred_sum, 1).astype(preds_ref.dtype)

    # TODO(synk): for pred_len >> 4, switch to stacked K-powers
    # ([I, K, K^2, ...] concatenated on lanes) + one large lane-dense matmul
    # to break the serial (P x E)(E x E) MXU dependency chain.
    def roll_body(i, zp):
        zp = jnp.einsum('bpe,bef->bpf', zp, K,
                        preferred_element_type=jnp.float32)
        preds_ref[:, pl.ds(i, 1), :, :] = (
            jnp.expand_dims(zp, 1).astype(preds_ref.dtype))
        return zp

    jax.lax.fori_loop(1, pred_len, roll_body, pred_sum)


def _vmem_caps():
    """(physical capacity, block-sizing budget, scoped limit) in bytes."""
    cap = None
    try:
        cap = pltpu.get_tpu_info().vmem_capacity_bytes
    except Exception:
        cap = None
    if not cap:
        cap = 64 << 20  # conservative fallback: v7x per-TensorCore VMEM
    budget = (cap * 5) // 8  # 40 MiB on v7x, 80 MiB on v5e/v6e
    limit = (cap * 3) // 4   # 48 MiB on v7x, 96 MiB on v5e/v6e
    return cap, budget, limit


def _pick_batch_block(B, per_batch_bytes, budget_bytes):
    """Largest batch block that (a) divides B, (b) fits the VMEM budget and
    (c) leaves >= 2 (preferably even) grid steps whenever B > 1 so v7x's two
    TensorCores both get work from the 'parallel' batch axis."""
    max_bb = max(1, budget_bytes // max(per_batch_bytes, 1))
    if B > 1:
        max_bb = min(max_bb, max(1, B // 2))
    divisors = [d for d in range(1, B + 1) if B % d == 0 and d <= max_bb]
    if not divisors:
        return 1
    best = max(divisors)
    even = [d for d in divisors if (B // d) % 2 == 0 and 2 * d >= best]
    if even:
        best = max(even)
    return best


def kp_layer_forward(z, label, pred_z, pred_len=1):
    B, T, E = z.shape
    P = pred_z.shape[1]
    dt_in = jnp.dtype(z.dtype).itemsize

    # Wrapper "glue": reduce z and label to (B, E, E) f32 statistics so the
    # kernel never streams `label`, and all iterative quantities stay f32.
    # TODO(synk): torch.linalg.lstsq is a pivoted-QR solve; there is no clean
    # Pallas equivalent, so f32 normal equations with a tiny relative ridge
    # (and jnp.linalg.inv in the wrapper) are used instead.
    z32 = z.astype(jnp.float32)
    l32 = label.astype(jnp.float32)
    gram = jnp.einsum('bte,btf->bef', z32, z32)           # (B, E, E) f32
    ztl = jnp.einsum('bte,btf->bef', z32, l32)            # (B, E, E) f32
    tr = jnp.trace(gram, axis1=-2, axis2=-1)              # (B,)
    ridge = (1e-6 * tr / E)[:, None, None] * jnp.eye(E, dtype=jnp.float32)
    ainv = jnp.linalg.inv(gram + ridge)                   # (B, E, E) f32

    cap, budget, limit = _vmem_caps()

    # Per-batch VMEM bytes: double-buffered I/O blocks + in-kernel f32 temps.
    in_bytes = (T * E + P * E) * dt_in + 3 * E * E * 4
    out_bytes = (T * E + pred_len * P * E) * dt_in
    live_f32 = (T * E + 2 * P * E + 4 * E * E) * 4
    per_batch = 2 * (in_bytes + out_bytes) + live_f32
    if per_batch > budget:
        # TODO(synk): add a T-tiling grid axis when a single batch element
        # overflows the budget; for now raise the scoped limit toward capacity.
        limit = min(cap, per_batch + (8 << 20))
    Bb = _pick_batch_block(B, per_batch, budget)
    grid = (B // Bb,)

    kernel = functools.partial(kp_kernel, pred_len=pred_len)
    # TODO(synk): with E < 128 the rec store is still lane-masked; a fully
    # lane-dense layout would need an in-kernel (T, E) -> T*E relayout, and
    # the small-E matmuls underfill the MXU lanes (block-diag K packing).
    rec, preds4 = pl.pallas_call(
        kernel,
        out_shape=(
            jax.ShapeDtypeStruct((B, T, E), z.dtype),
            jax.ShapeDtypeStruct((B, pred_len, P, E), z.dtype),
        ),
        grid_spec=pltpu.PrefetchScalarGridSpec(
            num_scalar_prefetch=0,
            grid=grid,
            in_specs=[
                pl.BlockSpec((Bb, T, E), lambda b: (b, 0, 0)),
                pl.BlockSpec((Bb, P, E), lambda b: (b, 0, 0)),
                pl.BlockSpec((Bb, E, E), lambda b: (b, 0, 0)),
                pl.BlockSpec((Bb, E, E), lambda b: (b, 0, 0)),
                pl.BlockSpec((Bb, E, E), lambda b: (b, 0, 0)),
            ],
            out_specs=(
                pl.BlockSpec((Bb, T, E), lambda b: (b, 0, 0)),
                pl.BlockSpec((Bb, pred_len, P, E), lambda b: (b, 0, 0, 0)),
            ),
        ),
        compiler_params=pltpu.CompilerParams(
            dimension_semantics=("parallel",),
            vmem_limit_bytes=int(limit)),
    )(z, pred_z, gram, ainv, ztl)

    # (B, pred_len, P, E) -> (B, pred_len*P, E): contiguous reshape (no copy),
    # identical ordering to torch.cat(preds, dim=1).
    return rec, preds4.reshape(B, pred_len * P, E)


def kp_layer_reference(z, label, pred_z, pred_len=1):
    """Pure-JAX reference mirroring the PyTorch loop (same normal-equation
    least squares + ridge as the kernel wrapper)."""
    z = z.astype(jnp.float32)
    lab = label.astype(jnp.float32)
    pz = pred_z.astype(jnp.float32)
    E = z.shape[-1]
    gram = jnp.einsum('bte,btf->bef', z, z)
    tr = jnp.trace(gram, axis1=-2, axis2=-1)
    ridge = (1e-6 * tr / E)[:, None, None] * jnp.eye(E, dtype=jnp.float32)
    ainv = jnp.linalg.inv(gram + ridge)
    rec_sum = jnp.zeros_like(z)
    pred_sum = jnp.zeros_like(pz)
    K = None
    for _ in range(NUM_ITERS):
        K = ainv @ jnp.einsum('bte,btf->bef', z, lab)
        pred_sum = pred_sum + pz @ K
        rec = z @ K
        rec_sum = rec_sum + rec
        lab = lab - rec
    preds = [pred_sum]
    zp = pred_sum
    for _ in range(1, pred_len):
        zp = zp @ K
        preds.append(zp)
    return rec_sum, jnp.concatenate(preds, axis=1)


if __name__ == "__main__":
    B, T, E, P = 2, 16, 8, 4
    pred_len = 3

    key = jax.random.PRNGKey(0)
    k1, k2, k3 = jax.random.split(key, 3)
    z = jax.random.normal(k1, (B, T, E), dtype=jnp.float32)
    label = jax.random.normal(k2, (B, T, E), dtype=jnp.float32)
    pred_z = jax.random.normal(k3, (B, P, E), dtype=jnp.float32)

    rec, preds = kp_layer_forward(z, label, pred_z, pred_len=pred_len)
    rec = jax.block_until_ready(rec)
    preds = jax.block_until_ready(preds)

    rec_ref, preds_ref = kp_layer_reference(z, label, pred_z, pred_len=pred_len)

    assert rec.shape == (B, T, E)
    assert preds.shape == (B, P * pred_len, E)
    assert jnp.allclose(rec, rec_ref, rtol=1e-3, atol=1e-3), \
        float(jnp.max(jnp.abs(rec - rec_ref)))
    assert jnp.allclose(preds, preds_ref, rtol=1e-3, atol=1e-3), \
        float(jnp.max(jnp.abs(preds - preds_ref)))

    print("KERNEL_OK")
</pallas_src>

<mosaic_0001>
module attributes {stable_mosaic.version = 11 : i64} {
  func.func @kp_kernel(%arg0: i32, %arg1: memref<1x16x8xf32, #tpu.memory_space<vmem>>, %arg2: memref<1x4x8xf32, #tpu.memory_space<vmem>>, %arg3: memref<1x8x8xf32, #tpu.memory_space<vmem>>, %arg4: memref<1x8x8xf32, #tpu.memory_space<vmem>>, %arg5: memref<1x8x8xf32, #tpu.memory_space<vmem>>, %arg6: memref<1x16x8xf32, #tpu.memory_space<vmem>>, %arg7: memref<1x3x4x8xf32, #tpu.memory_space<vmem>>) attributes {dimension_semantics = [#tpu.dimension_semantics<parallel>], iteration_bounds = array<i64: 2>, scalar_prefetch = 0 : i64, scratch_operands = 0 : i64, tpu.core_type = #tpu.core_type<tc>, window_params = [{transform_indices = @transform_0, window_bounds = array<i64: 1, 16, 8>}, {transform_indices = @transform_1, window_bounds = array<i64: 1, 4, 8>}, {transform_indices = @transform_2, window_bounds = array<i64: 1, 8, 8>}, {transform_indices = @transform_3, window_bounds = array<i64: 1, 8, 8>}, {transform_indices = @transform_4, window_bounds = array<i64: 1, 8, 8>}, {transform_indices = @transform_5, window_bounds = array<i64: 1, 16, 8>}, {transform_indices = @transform_6, window_bounds = array<i64: 1, 3, 4, 8>}]} {
    %c0 = arith.constant 0 : index
    %c0_0 = arith.constant 0 : index
    %c0_1 = arith.constant 0 : index
    %0 = vector.load %arg3[%c0, %c0_0, %c0_1] : memref<1x8x8xf32, #tpu.memory_space<vmem>>, vector<1x8x8xf32>
    %c0_2 = arith.constant 0 : index
    %c0_3 = arith.constant 0 : index
    %c0_4 = arith.constant 0 : index
    %1 = vector.load %arg4[%c0_2, %c0_3, %c0_4] : memref<1x8x8xf32, #tpu.memory_space<vmem>>, vector<1x8x8xf32>
    %c0_5 = arith.constant 0 : index
    %c0_6 = arith.constant 0 : index
    %c0_7 = arith.constant 0 : index
    %2 = vector.load %arg5[%c0_5, %c0_6, %c0_7] : memref<1x8x8xf32, #tpu.memory_space<vmem>>, vector<1x8x8xf32>
    %cst = arith.constant 0.000000e+00 : f32
    %3 = vector.broadcast %cst : f32 to vector<1x8x8xf32>
    "tpu.trace_start"() <{level = 10 : i32, message = "bef,bfg->beg"}> : () -> ()
    %cst_8 = arith.constant dense<0.000000e+00> : vector<1x8x8xf32>
    %4 = tpu.matmul %1, %2, %cst_8 {dimension_numbers = #tpu.dot_dimension_numbers<[2], [1], [1], [2], [0, 0, 0, 1, 1, 2], [0], [0]>} : vector<1x8x8xf32>, vector<1x8x8xf32>, vector<1x8x8xf32> -> vector<1x8x8xf32>
    "tpu.trace_stop"() : () -> ()
    %5 = arith.addf %3, %4 : vector<1x8x8xf32>
    "tpu.trace_start"() <{level = 10 : i32, message = "bef,bfg->beg"}> : () -> ()
    %cst_9 = arith.constant dense<0.000000e+00> : vector<1x8x8xf32>
    %6 = tpu.matmul %0, %4, %cst_9 {dimension_numbers = #tpu.dot_dimension_numbers<[2], [1], [1], [2], [0, 0, 0, 1, 1, 2], [0], [0]>} : vector<1x8x8xf32>, vector<1x8x8xf32>, vector<1x8x8xf32> -> vector<1x8x8xf32>
    "tpu.trace_stop"() : () -> ()
    %7 = arith.subf %2, %6 : vector<1x8x8xf32>
    "tpu.trace_start"() <{level = 10 : i32, message = "bef,bfg->beg"}> : () -> ()
    %cst_10 = arith.constant dense<0.000000e+00> : vector<1x8x8xf32>
    %8 = tpu.matmul %1, %7, %cst_10 {dimension_numbers = #tpu.dot_dimension_numbers<[2], [1], [1], [2], [0, 0, 0, 1, 1, 2], [0], [0]>} : vector<1x8x8xf32>, vector<1x8x8xf32>, vector<1x8x8xf32> -> vector<1x8x8xf32>
    "tpu.trace_stop"() : () -> ()
    %9 = arith.addf %5, %8 : vector<1x8x8xf32>
    "tpu.trace_start"() <{level = 10 : i32, message = "bef,bfg->beg"}> : () -> ()
    %cst_11 = arith.constant dense<0.000000e+00> : vector<1x8x8xf32>
    %10 = tpu.matmul %0, %8, %cst_11 {dimension_numbers = #tpu.dot_dimension_numbers<[2], [1], [1], [2], [0, 0, 0, 1, 1, 2], [0], [0]>} : vector<1x8x8xf32>, vector<1x8x8xf32>, vector<1x8x8xf32> -> vector<1x8x8xf32>
    "tpu.trace_stop"() : () -> ()
    %11 = arith.subf %7, %10 : vector<1x8x8xf32>
    "tpu.trace_start"() <{level = 10 : i32, message = "bef,bfg->beg"}> : () -> ()
    %cst_12 = arith.constant dense<0.000000e+00> : vector<1x8x8xf32>
    %12 = tpu.matmul %1, %11, %cst_12 {dimension_numbers = #tpu.dot_dimension_numbers<[2], [1], [1], [2], [0, 0, 0, 1, 1, 2], [0], [0]>} : vector<1x8x8xf32>, vector<1x8x8xf32>, vector<1x8x8xf32> -> vector<1x8x8xf32>
    "tpu.trace_stop"() : () -> ()
    %13 = arith.addf %9, %12 : vector<1x8x8xf32>
    %c0_13 = arith.constant 0 : index
    %c0_14 = arith.constant 0 : index
    %c0_15 = arith.constant 0 : index
    %14 = vector.load %arg1[%c0_13, %c0_14, %c0_15] : memref<1x16x8xf32, #tpu.memory_space<vmem>>, vector<1x16x8xf32>
    "tpu.trace_start"() <{level = 10 : i32, message = "bte,bef->btf"}> : () -> ()
    %cst_16 = arith.constant dense<0.000000e+00> : vector<1x16x8xf32>
    %15 = tpu.matmul %14, %13, %cst_16 {dimension_numbers = #tpu.dot_dimension_numbers<[2], [1], [1], [2], [0, 0, 0, 1, 1, 2], [0], [0]>} : vector<1x16x8xf32>, vector<1x8x8xf32>, vector<1x16x8xf32> -> vector<1x16x8xf32>
    "tpu.trace_stop"() : () -> ()
    %c0_17 = arith.constant 0 : index
    %c0_18 = arith.constant 0 : index
    %c0_19 = arith.constant 0 : index
    %16 = vector.load %arg6[%c0_17, %c0_18, %c0_19] : memref<1x16x8xf32, #tpu.memory_space<vmem>>, vector<1x16x8xf32>
    tpu.vector_store %arg6[%c0_17, %c0_18, %c0_19], %15 {strides = array<i32>} : memref<1x16x8xf32, #tpu.memory_space<vmem>>, vector<1x16x8xf32>,
    %c0_20 = arith.constant 0 : index
    %c0_21 = arith.constant 0 : index
    %c0_22 = arith.constant 0 : index
    %17 = vector.load %arg2[%c0_20, %c0_21, %c0_22] : memref<1x4x8xf32, #tpu.memory_space<vmem>>, vector<1x4x8xf32>
    "tpu.trace_start"() <{level = 10 : i32, message = "bpe,bef->bpf"}> : () -> ()
    %cst_23 = arith.constant dense<0.000000e+00> : vector<1x4x8xf32>
    %18 = tpu.matmul %17, %13, %cst_23 {dimension_numbers = #tpu.dot_dimension_numbers<[2], [1], [1], [2], [0, 0, 0, 1, 1, 2], [0], [0]>} : vector<1x4x8xf32>, vector<1x8x8xf32>, vector<1x4x8xf32> -> vector<1x4x8xf32>
    "tpu.trace_stop"() : () -> ()
    %19 = vector.shape_cast %18 : vector<1x4x8xf32> to vector<1x1x4x8xf32>
    %c0_24 = arith.constant 0 : index
    %c0_25 = arith.constant 0 : index
    %c0_26 = arith.constant 0 : index
    %c0_27 = arith.constant 0 : index
    %20 = vector.load %arg7[%c0_24, %c0_25, %c0_26, %c0_27] : memref<1x3x4x8xf32, #tpu.memory_space<vmem>>, vector<1x1x4x8xf32>
    tpu.vector_store %arg7[%c0_24, %c0_25, %c0_26, %c0_27], %19 {strides = array<i32>} : memref<1x3x4x8xf32, #tpu.memory_space<vmem>>, vector<1x1x4x8xf32>,
    %c1_i32 = arith.constant 1 : i32
    %c2_i32 = arith.constant 2 : i32
    %21 = arith.addi %c1_i32, %c2_i32 : i32
    %c1_i32_28 = arith.constant 1 : i32
    %22 = scf.for %arg8 = %c1_i32 to %21 step %c1_i32_28 iter_args(%arg9 = %18) -> (vector<1x4x8xf32>)  : i32 {
      "tpu.trace_start"() <{level = 10 : i32, message = "bpe,bef->bpf"}> : () -> ()
      %cst_30 = arith.constant dense<0.000000e+00> : vector<1x4x8xf32>
      %23 = tpu.matmul %arg9, %12, %cst_30 {dimension_numbers = #tpu.dot_dimension_numbers<[2], [1], [1], [2], [0, 0, 0, 1, 1, 2], [0], [0]>} : vector<1x4x8xf32>, vector<1x8x8xf32>, vector<1x4x8xf32> -> vector<1x4x8xf32>
      "tpu.trace_stop"() : () -> ()
      %24 = vector.shape_cast %23 : vector<1x4x8xf32> to vector<1x1x4x8xf32>
      %c0_31 = arith.constant 0 : index
      %25 = arith.index_cast %arg8 : i32 to index
      %c0_32 = arith.constant 0 : index
      %c0_33 = arith.constant 0 : index
      %26 = vector.load %arg7[%c0_31, %25, %c0_32, %c0_33] : memref<1x3x4x8xf32, #tpu.memory_space<vmem>>, vector<1x1x4x8xf32>
      tpu.vector_store %arg7[%c0_31, %25, %c0_32, %c0_33], %24 {strides = array<i32>} : memref<1x3x4x8xf32, #tpu.memory_space<vmem>>, vector<1x1x4x8xf32>,
      scf.yield %23 : vector<1x4x8xf32>
    }
    %c2_i32_29 = arith.constant 2 : i32
    return
  }
  func.func @transform_0(%arg0: i32) -> (i32, i32, i32) {
    %c0_i32 = arith.constant 0 : i32
    %c0_i32_0 = arith.constant 0 : i32
    %c0_i32_1 = arith.constant 0 : i32
    return %arg0, %c0_i32, %c0_i32_0 : i32, i32, i32
  }
  func.func @transform_1(%arg0: i32) -> (i32, i32, i32) {
    %c0_i32 = arith.constant 0 : i32
    %c0_i32_0 = arith.constant 0 : i32
    %c0_i32_1 = arith.constant 0 : i32
    return %arg0, %c0_i32, %c0_i32_0 : i32, i32, i32
  }
  func.func @transform_2(%arg0: i32) -> (i32, i32, i32) {
    %c0_i32 = arith.constant 0 : i32
    %c0_i32_0 = arith.constant 0 : i32
    %c0_i32_1 = arith.constant 0 : i32
    return %arg0, %c0_i32, %c0_i32_0 : i32, i32, i32
  }
  func.func @transform_3(%arg0: i32) -> (i32, i32, i32) {
    %c0_i32 = arith.constant 0 : i32
    %c0_i32_0 = arith.constant 0 : i32
    %c0_i32_1 = arith.constant 0 : i32
    return %arg0, %c0_i32, %c0_i32_0 : i32, i32, i32
  }
  func.func @transform_4(%arg0: i32) -> (i32, i32, i32) {
    %c0_i32 = arith.constant 0 : i32
    %c0_i32_0 = arith.constant 0 : i32
    %c0_i32_1 = arith.constant 0 : i32
    return %arg0, %c0_i32, %c0_i32_0 : i32, i32, i32
  }
  func.func @transform_5(%arg0: i32) -> (i32, i32, i32) {
    %c0_i32 = arith.constant 0 : i32
    %c0_i32_0 = arith.constant 0 : i32
    %c0_i32_1 = arith.constant 0 : i32
    return %arg0, %c0_i32, %c0_i32_0 : i32, i32, i32
  }
  func.func @transform_6(%arg0: i32) -> (i32, i32, i32, i32) {
    %c0_i32 = arith.constant 0 : i32
    %c0_i32_0 = arith.constant 0 : i32
    %c0_i32_1 = arith.constant 0 : i32
    %c0_i32_2 = arith.constant 0 : i32
    return %arg0, %c0_i32, %c0_i32_0, %c0_i32_1 : i32, i32, i32, i32
  }
}

</mosaic_0001>

<llo_original>
// kernel: tpu_custom_call.1
$region0: #{tpu_custom_call.1}
  #allocation0 [shape = 'u32[]', space=smem, size = 0x4, offset = 0x4, fixed_abs, tag = 'smem constant byte address 0x4 - core index']
  #allocation1 [shape = 'u32[144,128]{1,0:T(1,128)}', space=vmem, size = 0x12000, scoped, tag = 'internal scratch']
  %s0 = inlined_call_operand.vmem [shape: f32[2,16,8], index: 0, kind: input, shape index: {}]
  %s1 = inlined_call_operand.hbm [shape: f32[2,4,8], index: 1, kind: input, shape index: {}]
  %s2 = inlined_call_operand.vmem [shape: f32[2,8,8], index: 2, kind: input, shape index: {}]
  %s3 = inlined_call_operand.vmem [shape: f32[2,8,8], index: 3, kind: input, shape index: {}]
  %s4 = inlined_call_operand.vmem [shape: f32[2,8,8], index: 4, kind: input, shape index: {}]
  %s5 = inlined_call_operand.vmem [shape: f32[2,16,8], index: 5, kind: output, shape index: {0}]
  %s6 = inlined_call_operand.hbm [shape: f32[2,3,4,8], index: 6, kind: output, shape index: {1}]
  %7 = xla_tuple %s5, %s6
  %s8 = sld [smem:[#allocation0]]
  $region72: #{tpu_custom_call.1} parent=0
    _
  %s10 = ssub.s32 1, %s8
  %s11 = scalar_select 0, %s10, %s8
  $region1: #{tpu_custom_call.1} parent=0
    #allocation2 [shape = 'u8[4096]{0}', space=vmem, size = 0x1000, scoped, tag = 'input window, operand 1']
    #allocation3 [shape = 's32[2]{0}', space=sflag, size = 0x8, scoped, tag = 'scoped memory for tpu_custom_call.1']
    #allocation4 [shape = 's32[2]{0}', space=sflag, size = 0x8, scoped, tag = 'scoped memory for tpu_custom_call.1']
    #allocation5 [shape = 'u8[12288]{0}', space=vmem, size = 0x3000, scoped, tag = 'output window, operand 1']
    %12 = vsyncpa [#allocation3], 0
    %s13 = scalar_lea.sflag [#allocation3], 1
    %14 = vsyncpa %s13, 0
    %15 = vsyncpa [#allocation4], 0
    %s16 = scalar_lea.sflag [#allocation4], 1
    %17 = vsyncpa %s16, 0
    loop: start=0, step=1, limit=4
    $region2: #{tpu_custom_call.1} parent=1 // loop_pre_header
      _
    $region3: #{tpu_custom_call.1} parent=1 // loop_header
      %s19 = sphi 0, %s23
      %p20 = scmp.ge.s32.totalorder %s19, 4
      %s29 = sphi 0, %s31
      %s32 = sphi 0, %s29
      %s33 = sphi 0, %s32
      %s49 = sphi 0, %s33
      %s55 = sphi 0, %s57
      %s58 = sphi 0, %s55
      %s59 = sphi 0, %s58
      %s75 = sphi 0, %s59
      %s81 = sphi 0, %s83
      %s84 = sphi 0, %s81
      %s85 = sphi 0, %s84
      %s101 = sphi 0, %s85
      %s107 = sphi 0, %s109
      %s110 = sphi 0, %s107
      %s111 = sphi 0, %s110
      %s127 = sphi 0, %s111
      %s133 = sphi 0, %s135
      %s136 = sphi 0, %s133
      %s137 = sphi 0, %s136
      %s153 = sphi 0, %s137
      %s159 = sphi 0, %s161
      %s162 = sphi 0, %s159
      %s163 = sphi 0, %s162
      %s179 = sphi 0, %s163
      %s185 = sphi 0, %s187
      %s188 = sphi 0, %s185
      %s189 = sphi 0, %s188
      %s205 = sphi 0, %s189
    $region4: #{tpu_custom_call.1} parent=1 // loop_header_branch
      %22 = sbr.rel (%p20) target = $region8
    $region5: #{tpu_custom_call.1} parent=1 // loop_body
      %s24 = ssub.s32 %s19, 1
      %s25 = ssub.s32 %s19, 2
      %s26 = sadd.s32 %s19, 1
      %s27 = ssub.s32 %s19, %s26
      %p28 = scmp.eq.s32.totalorder %s27, 0
      %s30 = sadd.s32 %s29, 1
      %s31 = scalar_select %p28, %s29, %s30
      %p34 = pneg %p28
      %p35 = scmp.eq.s32.totalorder %s19, 1
      %p36 = por %p34, %p35
      %p37 = scmp.ne.s32.totalorder %s29, %s32
      %p38 = scmp.eq.s32.totalorder %s19, 0
      %p39 = por %p37, %p38
      %p40 = scmp.ne.s32.totalorder %s29, %s32
      %p41 = scmp.eq.s32.totalorder %s24, 1
      %p42 = por %p40, %p41
      %p43 = scmp.ne.s32.totalorder %s32, %s33
      %p44 = scmp.eq.s32.totalorder %s24, 0
      %p45 = por %p43, %p44
      %p46 = scmp.ne.s32.totalorder %s32, %s33
      %p47 = scmp.eq.s32.totalorder %s25, 1
      %p48 = por %p46, %p47
      %p50 = scmp.ne.s32.totalorder %s33, %s49
      %p51 = scmp.eq.s32.totalorder %s25, 0
      %p52 = por %p50, %p51
      %s53 = ssub.s32 %s19, %s26
      %p54 = scmp.eq.s32.totalorder %s53, 0
      %s56 = sadd.s32 %s55, 1
      %s57 = scalar_select %p54, %s55, %s56
      %p60 = pneg %p54
      %p61 = scmp.eq.s32.totalorder %s19, 1
      %p62 = por %p60, %p61
      %p63 = scmp.ne.s32.totalorder %s55, %s58
      %p64 = scmp.eq.s32.totalorder %s19, 0
      %p65 = por %p63, %p64
      %p66 = scmp.ne.s32.totalorder %s55, %s58
      %p67 = scmp.eq.s32.totalorder %s24, 1
      %p68 = por %p66, %p67
      %p69 = scmp.ne.s32.totalorder %s58, %s59
      %p70 = scmp.eq.s32.totalorder %s24, 0
      %p71 = por %p69, %p70
      %p72 = scmp.ne.s32.totalorder %s58, %s59
      %p73 = scmp.eq.s32.totalorder %s25, 1
      %p74 = por %p72, %p73
      %p76 = scmp.ne.s32.totalorder %s59, %s75
      %p77 = scmp.eq.s32.totalorder %s25, 0
      %p78 = por %p76, %p77
      %s79 = ssub.s32 %s19, %s26
      %p80 = scmp.eq.s32.totalorder %s79, 0
      %s82 = sadd.s32 %s81, 1
      %s83 = scalar_select %p80, %s81, %s82
      %p86 = pneg %p80
      %p87 = scmp.eq.s32.totalorder %s19, 1
      %p88 = por %p86, %p87
      %p89 = scmp.ne.s32.totalorder %s81, %s84
      %p90 = scmp.eq.s32.totalorder %s19, 0
      %p91 = por %p89, %p90
      %p92 = scmp.ne.s32.totalorder %s81, %s84
      %p93 = scmp.eq.s32.totalorder %s24, 1
      %p94 = por %p92, %p93
      %p95 = scmp.ne.s32.totalorder %s84, %s85
      %p96 = scmp.eq.s32.totalorder %s24, 0
      %p97 = por %p95, %p96
      %p98 = scmp.ne.s32.totalorder %s84, %s85
      %p99 = scmp.eq.s32.totalorder %s25, 1
      %p100 = por %p98, %p99
      %p102 = scmp.ne.s32.totalorder %s85, %s101
      %p103 = scmp.eq.s32.totalorder %s25, 0
      %p104 = por %p102, %p103
      %s105 = ssub.s32 %s19, %s26
      %p106 = scmp.eq.s32.totalorder %s105, 0
      %s108 = sadd.s32 %s107, 1
      %s109 = scalar_select %p106, %s107, %s108
      %p112 = pneg %p106
      %p113 = scmp.eq.s32.totalorder %s19, 1
      %p114 = por %p112, %p113
      %p115 = scmp.ne.s32.totalorder %s107, %s110
      %p116 = scmp.eq.s32.totalorder %s19, 0
      %p117 = por %p115, %p116
      %p118 = scmp.ne.s32.totalorder %s107, %s110
      %p119 = scmp.eq.s32.totalorder %s24, 1
      %p120 = por %p118, %p119
      %p121 = scmp.ne.s32.totalorder %s110, %s111
      %p122 = scmp.eq.s32.totalorder %s24, 0
      %p123 = por %p121, %p122
      %p124 = scmp.ne.s32.totalorder %s110, %s111
      %p125 = scmp.eq.s32.totalorder %s25, 1
      %p126 = por %p124, %p125
      %p128 = scmp.ne.s32.totalorder %s111, %s127
      %p129 = scmp.eq.s32.totalorder %s25, 0
      %p130 = por %p128, %p129
      %s131 = ssub.s32 %s19, %s26
      %p132 = scmp.eq.s32.totalorder %s131, 0
      %s134 = sadd.s32 %s133, 1
      %s135 = scalar_select %p132, %s133, %s134
      %p138 = pneg %p132
      %p139 = scmp.eq.s32.totalorder %s19, 1
      %p140 = por %p138, %p139
      %p141 = scmp.ne.s32.totalorder %s133, %s136
      %p142 = scmp.eq.s32.totalorder %s19, 0
      %p143 = por %p141, %p142
      %p144 = scmp.ne.s32.totalorder %s133, %s136
      %p145 = scmp.eq.s32.totalorder %s24, 1
      %p146 = por %p144, %p145
      %p147 = scmp.ne.s32.totalorder %s136, %s137
      %p148 = scmp.eq.s32.totalorder %s24, 0
      %p149 = por %p147, %p148
      %p150 = scmp.ne.s32.totalorder %s136, %s137
      %p151 = scmp.eq.s32.totalorder %s25, 1
      %p152 = por %p150, %p151
      %p154 = scmp.ne.s32.totalorder %s137, %s153
      %p155 = scmp.eq.s32.totalorder %s25, 0
      %p156 = por %p154, %p155
      %s157 = ssub.s32 %s19, %s26
      %p158 = scmp.eq.s32.totalorder %s157, 0
      %s160 = sadd.s32 %s159, 1
      %s161 = scalar_select %p158, %s159, %s160
      %p164 = pneg %p158
      %p165 = scmp.eq.s32.totalorder %s19, 1
      %p166 = por %p164, %p165
      %p167 = scmp.ne.s32.totalorder %s159, %s162
      %p168 = scmp.eq.s32.totalorder %s19, 0
      %p169 = por %p167, %p168
      %p170 = scmp.ne.s32.totalorder %s159, %s162
      %p171 = scmp.eq.s32.totalorder %s24, 1
      %p172 = por %p170, %p171
      %p173 = scmp.ne.s32.totalorder %s162, %s163
      %p174 = scmp.eq.s32.totalorder %s24, 0
      %p175 = por %p173, %p174
      %p176 = scmp.ne.s32.totalorder %s162, %s163
      %p177 = scmp.eq.s32.totalorder %s25, 1
      %p178 = por %p176, %p177
      %p180 = scmp.ne.s32.totalorder %s163, %s179
      %p181 = scmp.eq.s32.totalorder %s25, 0
      %p182 = por %p180, %p181
      %s183 = ssub.s32 %s19, %s26
      %p184 = scmp.eq.s32.totalorder %s183, 0
      %s186 = sadd.s32 %s185, 1
      %s187 = scalar_select %p184, %s185, %s186
      %p190 = pneg %p184
      %p191 = scmp.eq.s32.totalorder %s19, 1
      %p192 = por %p190, %p191
      %p193 = scmp.ne.s32.totalorder %s185, %s188
      %p194 = scmp.eq.s32.totalorder %s19, 0
      %p195 = por %p193, %p194
      %p196 = scmp.ne.s32.totalorder %s185, %s188
      %p197 = scmp.eq.s32.totalorder %s24, 1
      %p198 = por %p196, %p197
      %p199 = scmp.ne.s32.totalorder %s188, %s189
      %p200 = scmp.eq.s32.totalorder %s24, 0
      %p201 = por %p199, %p200
      %p202 = scmp.ne.s32.totalorder %s188, %s189
      %p203 = scmp.eq.s32.totalorder %s25, 1
      %p204 = por %p202, %p203
      %p206 = scmp.ne.s32.totalorder %s189, %s205
      %p207 = scmp.eq.s32.totalorder %s25, 0
      %p208 = por %p206, %p207
      %p209 = scmp.le.s32.totalorder 1, %s19
      %p210 = scmp.lt.s32.totalorder %s19, 3
      %p211 = pnand %p209, %p210
      %p212 = pneg %p211
      // Predicated region
      $region9: #{tpu_custom_call.1} parent=5 // pred_check
        _
      $region10: #{tpu_custom_call.1} parent=5 // pred_check_branch
        %214 = sbr.rel (%p211) target = $region12
      $region11: #{tpu_custom_call.1} parent=5 // pred_region
        %s215 = ssub.s32 %s19, 1
      $region12: #{tpu_custom_call.1} parent=5 // pred_fallthru
        _
      %p216 = scmp.lt.s32.totalorder %s19, 2
      // Predicated region
      $region13: #{tpu_custom_call.1} parent=5 // pred_check
        %p217 = pneg %p216
      $region14: #{tpu_custom_call.1} parent=5 // pred_check_branch
        %219 = sbr.rel (%p217) target = $region16
      $region15: #{tpu_custom_call.1} parent=5 // pred_region
        // Predicated region
        $region17: #{tpu_custom_call.1} parent=15 // pred_check
          %p220 = pneg %p39
        $region18: #{tpu_custom_call.1} parent=15 // pred_check_branch
          %222 = sbr.rel (%p220) target = $region20
        $region19: #{tpu_custom_call.1} parent=15 // pred_region
          %p223 = scmp.lt.s32.totalorder %s19, 1
          %s224 = scalar_select %p223, %s19, 1
          %s225 = smul.addr %s224, 2
          %s226 = smul.addr %s225, 8
          %s227 = scalar_lea.vmem %s0, %s226
        $region20: #{tpu_custom_call.1} parent=15 // pred_fallthru
          _
        // Predicated region
        $region21: #{tpu_custom_call.1} parent=15 // pred_check
          %p228 = pneg %p65
        $region22: #{tpu_custom_call.1} parent=15 // pred_check_branch
          %230 = sbr.rel (%p228) target = $region24
        $region23: #{tpu_custom_call.1} parent=15 // pred_region
          %s231 = sand.u32 %s55, 1
          %s232 = scalar_lea.sflag [#allocation3], %s231
          %s233 = sand.u32 %s55, 1
          %s234 = smul.addr %s233, 4
          %s235 = scalar_lea.vmem [#allocation2], %s234
          %s237 = ssub.s32 64, 64
          %238 = vsyncadd %s232, %s237
          %s239 = smul.addr %s19, 64
          %s240 = scalar_lea.hbm %s1, %s239
          %s242 = sshll.u32 %s235, 4
          %s243 = int_to_ptr.vmem [resolvable:$true] %s242
          %245 = dma.hbm_to_vmem [thread:$0]  %s240, 64, %s243, %s232
        $region24: #{tpu_custom_call.1} parent=15 // pred_fallthru
          _
        // Predicated region
        $region25: #{tpu_custom_call.1} parent=15 // pred_check
          %p246 = pneg %p91
        $region26: #{tpu_custom_call.1} parent=15 // pred_check_branch
          %248 = sbr.rel (%p246) target = $region28
        $region27: #{tpu_custom_call.1} parent=15 // pred_region
          %p249 = scmp.lt.s32.totalorder %s19, 1
          %s250 = scalar_select %p249, %s19, 1
          %s251 = smul.addr %s250, 8
          %s252 = scalar_lea.vmem %s2, %s251
        $region28: #{tpu_custom_call.1} parent=15 // pred_fallthru
          _
        // Predicated region
        $region29: #{tpu_custom_call.1} parent=15 // pred_check
          %p253 = pneg %p117
        $region30: #{tpu_custom_call.1} parent=15 // pred_check_branch
          %255 = sbr.rel (%p253) target = $region32
        $region31: #{tpu_custom_call.1} parent=15 // pred_region
          %p256 = scmp.lt.s32.totalorder %s19, 1
          %s257 = scalar_select %p256, %s19, 1
          %s258 = smul.addr %s257, 8
          %s259 = scalar_lea.vmem %s3, %s258
        $region32: #{tpu_custom_call.1} parent=15 // pred_fallthru
          _
        // Predicated region
        $region33: #{tpu_custom_call.1} parent=15 // pred_check
          %p260 = pneg %p143
        $region34: #{tpu_custom_call.1} parent=15 // pred_check_branch
          %262 = sbr.rel (%p260) target = $region36
        $region35: #{tpu_custom_call.1} parent=15 // pred_region
          %p263 = scmp.lt.s32.totalorder %s19, 1
          %s264 = scalar_select %p263, %s19, 1
          %s265 = smul.addr %s264, 8
          %s266 = scalar_lea.vmem %s4, %s265
        $region36: #{tpu_custom_call.1} parent=15 // pred_fallthru
          _
      $region16: #{tpu_custom_call.1} parent=5 // pred_fallthru
        _
      %p267 = scmp.le.s32.totalorder 1, %s19
      %p268 = scmp.lt.s32.totalorder %s19, 3
      %p269 = pnand %p267, %p268
      %p270 = pneg %p269
      // Predicated region
      $region37: #{tpu_custom_call.1} parent=5 // pred_check
        _
      $region38: #{tpu_custom_call.1} parent=5 // pred_check_branch
        %272 = sbr.rel (%p269) target = $region40
      $region39: #{tpu_custom_call.1} parent=5 // pred_region
        %s273 = ssub.s32 %s19, 1
        %s274 = sand.u32 %s58, 1
        %s275 = scalar_lea.sflag [#allocation3], %s274
        %s276 = sand.u32 %s58, 1
        %s277 = smul.addr %s276, 4
        %s278 = scalar_lea.vmem [#allocation2], %s277
        // Predicated region
        $region41: #{tpu_custom_call.1} parent=39 // pred_check
          %p279 = pneg %p71
        $region42: #{tpu_custom_call.1} parent=39 // pred_check_branch
          %281 = sbr.rel (%p279) target = $region44
        $region43: #{tpu_custom_call.1} parent=39 // pred_region
          %282 = dma.done %s275, 64
        $region44: #{tpu_custom_call.1} parent=39 // pred_fallthru
          _
        %p283 = scmp.lt.s32.totalorder %s24, 1
        %s284 = scalar_select %p283, %s24, 1
        %s285 = smul.addr %s284, 2
        %s286 = smul.addr %s285, 8
        %s287 = scalar_lea.vmem %s0, %s286
        %p288 = pneg %p45
        %p289 = pneg %p42
        %s290 = sand.u32 %s58, 1
        %s291 = scalar_lea.sflag [#allocation3], %s290
        %s292 = sand.u32 %s58, 1
        %s293 = smul.addr %s292, 4
        %s294 = scalar_lea.vmem [#allocation2], %s293
        %p295 = pneg %p71
        %p296 = pneg %p68
        %p297 = scmp.lt.s32.totalorder %s24, 1
        %s298 = scalar_select %p297, %s24, 1
        %s299 = smul.addr %s298, 8
        %s300 = scalar_lea.vmem %s2, %s299
        %p301 = pneg %p97
        %p302 = pneg %p94
        %p303 = scmp.lt.s32.totalorder %s24, 1
        %s304 = scalar_select %p303, %s24, 1
        %s305 = smul.addr %s304, 8
        %s306 = scalar_lea.vmem %s3, %s305
        %p307 = pneg %p123
        %p308 = pneg %p120
        %p309 = scmp.lt.s32.totalorder %s24, 1
        %s310 = scalar_select %p309, %s24, 1
        %s311 = smul.addr %s310, 8
        %s312 = scalar_lea.vmem %s4, %s311
        %p313 = pneg %p149
        %p314 = pneg %p146
        %p315 = pneg %p175
        %p316 = pneg %p172
        %p317 = scmp.lt.s32.totalorder %s24, 1
        %s318 = scalar_select %p317, %s24, 1
        %s319 = smul.addr %s318, 2
        %s320 = smul.addr %s319, 8
        %s321 = scalar_lea.vmem %s5, %s320
        %p322 = pneg %p201
        %p323 = pneg %p198
        %s324 = sand.u32 %s188, 1
        %s325 = scalar_lea.sflag [#allocation4], %s324
        %s326 = sand.u32 %s188, 1
        %s327 = smul.addr %s326, 12
        %s328 = scalar_lea.vmem [#allocation5], %s327
        %p329 = scmp.lt.s32.totalorder %s24, 1
        %s330 = scalar_select %p329, %s24, 1
        %s331 = smul.addr %s330, 2
        %s332 = smul.addr %s331, 8
        %s333 = scalar_lea.vmem %s0, %s332
        %p334 = scmp.lt.s32.totalorder %s24, 1
        %s335 = scalar_select %p334, %s24, 1
        %s336 = smul.addr %s335, 8
        %s337 = scalar_lea.vmem %s2, %s336
        %p338 = scmp.lt.s32.totalorder %s24, 1
        %s339 = scalar_select %p338, %s24, 1
        %s340 = smul.addr %s339, 8
        %s341 = scalar_lea.vmem %s3, %s340
        %p342 = scmp.lt.s32.totalorder %s24, 1
        %s343 = scalar_select %p342, %s24, 1
        %s344 = smul.addr %s343, 8
        %s345 = scalar_lea.vmem %s4, %s344
        %p346 = scmp.lt.s32.totalorder %s24, 1
        %s347 = scalar_select %p346, %s24, 1
        %s348 = smul.addr %s347, 2
        %s349 = smul.addr %s348, 8
        %s350 = scalar_lea.vmem %s5, %s349
        %v351 = vld [vmem:[%s337] sm:$0xff]
        %v352 = vld [vmem:[%s341] sm:$0xff]
        %v353 = vld [vmem:[%s345] sm:$0xff]
        %vm354 = vcmask 64512
        %v356 = vsel %vm354, %v352, 0
        %358 = vmatprep.subr.mxu0 0.0
        %359 = vmatpush1.msra.mxu0 0.0
        %360 = vmatprep.subr.mxu0 0.0
        %361 = vmatpush1.msra.mxu0 0.0
        %362 = vmatprep.subr.mxu0 0.0
        %363 = vmatpush1.msra.mxu0 0.0
        %364 = vmatprep.subr.mxu0 0.0
        %365 = vmatpush1.msra.mxu0 0.0
        %366 = vmatprep.subr.mxu0 0.0
        %367 = vmatpush1.msra.mxu0 0.0
        %368 = vmatprep.subr.mxu0 0.0
        %369 = vmatpush1.msra.mxu0 0.0
        %370 = vmatprep.subr.mxu0 0.0
        %371 = vmatpush1.msra.mxu0 0.0
        %372 = vmatprep.subr.mxu0 0.0
        %373 = vmatpush1.msra.mxu0 0.0
        %374 = vmatprep.subr.mxu0 0.0
        %375 = vmatpush1.msra.mxu0 0.0
        %376 = vmatprep.subr.mxu0 0.0
        %377 = vmatpush1.msra.mxu0 0.0
        %378 = vmatprep.subr.mxu0 0.0
        %379 = vmatpush1.msra.mxu0 0.0
        %380 = vmatprep.subr.mxu0 0.0
        %381 = vmatpush1.msra.mxu0 0.0
        %382 = vmatprep.subr.mxu0 0.0
        %383 = vmatpush1.msra.mxu0 0.0
        %384 = vmatprep.subr.mxu0 0.0
        %385 = vmatpush1.msra.mxu0 0.0
        %386 = vmatprep.subr.mxu0 0.0
        %387 = vmatpush1.msra.mxu0 0.0
        %388 = vmatprep.subr.mxu0 0.0
        %389 = vmatpush1.msra.mxu0 %v353
        %390 = vmatprep.subr.mxu0 0.0
        %391 = vmatpush2.msra.mxu0 0.0
        %392 = vmatprep.subr.mxu0 0.0
        %393 = vmatpush2.msra.mxu0 0.0
        %394 = vmatprep.subr.mxu0 0.0
        %395 = vmatpush2.msra.mxu0 0.0
        %396 = vmatprep.subr.mxu0 0.0
        %397 = vmatpush2.msra.mxu0 0.0
        %398 = vmatprep.subr.mxu0 0.0
        %399 = vmatpush2.msra.mxu0 0.0
        %400 = vmatprep.subr.mxu0 0.0
        %401 = vmatpush2.msra.mxu0 0.0
        %402 = vmatprep.subr.mxu0 0.0
        %403 = vmatpush2.msra.mxu0 0.0
        %404 = vmatprep.subr.mxu0 0.0
        %405 = vmatpush2.msra.mxu0 0.0
        %406 = vmatprep.subr.mxu0 0.0
        %407 = vmatpush2.msra.mxu0 0.0
        %408 = vmatprep.subr.mxu0 0.0
        %409 = vmatpush2.msra.mxu0 0.0
        %410 = vmatprep.subr.mxu0 0.0
        %411 = vmatpush2.msra.mxu0 0.0
        %412 = vmatprep.subr.mxu0 0.0
        %413 = vmatpush2.msra.mxu0 0.0
        %414 = vmatprep.subr.mxu0 0.0
        %415 = vmatpush2.msra.mxu0 0.0
        %416 = vmatprep.subr.mxu0 0.0
        %417 = vmatpush2.msra.mxu0 0.0
        %418 = vmatprep.subr.mxu0 0.0
        %419 = vmatpush2.msra.mxu0 0.0
        %420 = vmatprep.subr.mxu0 0.0
        %421 = vmatpush2.msra.mxu0 0.0
        %422 = vmatprep.mubr.f32.mxu0 0.0
        %423 = vmatmul.mubr.f32.gmra.mxu0 %v356
        %v424 = vpop.f32.mrf.mxu0
        %v425 = vadd.f32 0.0, %v424
        %v426 = vpop.f32.mrf.mxu0
        %427 = vdwg.mxu0
        %v428 = vadd.f32 %v425, 0.0
        %v430 = vsel %vm354, %v351, 0
        %432 = vmatprep.subr.mxu0 0.0
        %433 = vmatpush1.msra.mxu0 0.0
        %434 = vmatprep.subr.mxu0 0.0
        %435 = vmatpush1.msra.mxu0 0.0
        %436 = vmatprep.subr.mxu0 0.0
        %437 = vmatpush1.msra.mxu0 0.0
        %438 = vmatprep.subr.mxu0 0.0
        %439 = vmatpush1.msra.mxu0 0.0
        %440 = vmatprep.subr.mxu0 0.0
        %441 = vmatpush1.msra.mxu0 0.0
        %442 = vmatprep.subr.mxu0 0.0
        %443 = vmatpush1.msra.mxu0 0.0
        %444 = vmatprep.subr.mxu0 0.0
        %445 = vmatpush1.msra.mxu0 0.0
        %446 = vmatprep.subr.mxu0 0.0
        %447 = vmatpush1.msra.mxu0 0.0
        %448 = vmatprep.subr.mxu0 0.0
        %449 = vmatpush1.msra.mxu0 0.0
        %450 = vmatprep.subr.mxu0 0.0
        %451 = vmatpush1.msra.mxu0 0.0
        %452 = vmatprep.subr.mxu0 0.0
        %453 = vmatpush1.msra.mxu0 0.0
        %454 = vmatprep.subr.mxu0 0.0
        %455 = vmatpush1.msra.mxu0 0.0
        %456 = vmatprep.subr.mxu0 0.0
        %457 = vmatpush1.msra.mxu0 0.0
        %458 = vmatprep.subr.mxu0 0.0
        %459 = vmatpush1.msra.mxu0 0.0
        %460 = vmatprep.subr.mxu0 0.0
        %461 = vmatpush1.msra.mxu0 0.0
        %462 = vmatprep.subr.mxu0 0.0
        %463 = vmatpush1.msra.mxu0 %v425
        %464 = vmatprep.subr.mxu0 0.0
        %465 = vmatpush2.msra.mxu0 0.0
        %466 = vmatprep.subr.mxu0 0.0
        %467 = vmatpush2.msra.mxu0 0.0
        %468 = vmatprep.subr.mxu0 0.0
        %469 = vmatpush2.msra.mxu0 0.0
        %470 = vmatprep.subr.mxu0 0.0
        %471 = vmatpush2.msra.mxu0 0.0
        %472 = vmatprep.subr.mxu0 0.0
        %473 = vmatpush2.msra.mxu0 0.0
        %474 = vmatprep.subr.mxu0 0.0
        %475 = vmatpush2.msra.mxu0 0.0
        %476 = vmatprep.subr.mxu0 0.0
        %477 = vmatpush2.msra.mxu0 0.0
        %478 = vmatprep.subr.mxu0 0.0
        %479 = vmatpush2.msra.mxu0 0.0
        %480 = vmatprep.subr.mxu0 0.0
        %481 = vmatpush2.msra.mxu0 0.0
        %482 = vmatprep.subr.mxu0 0.0
        %483 = vmatpush2.msra.mxu0 0.0
        %484 = vmatprep.subr.mxu0 0.0
        %485 = vmatpush2.msra.mxu0 0.0
        %486 = vmatprep.subr.mxu0 0.0
        %487 = vmatpush2.msra.mxu0 0.0
        %488 = vmatprep.subr.mxu0 0.0
        %489 = vmatpush2.msra.mxu0 0.0
        %490 = vmatprep.subr.mxu0 0.0
        %491 = vmatpush2.msra.mxu0 0.0
        %492 = vmatprep.subr.mxu0 0.0
        %493 = vmatpush2.msra.mxu0 0.0
        %494 = vmatprep.subr.mxu0 0.0
        %495 = vmatpush2.msra.mxu0 0.0
        %496 = vmatprep.mubr.f32.mxu0 0.0
        %497 = vmatmul.mubr.f32.gmra.mxu0 %v430
        %v498 = vpop.f32.mrf.mxu0
        %v499 = vadd.f32 0.0, %v498
        %v500 = vpop.f32.mrf.mxu0
        %501 = vdwg.mxu0
        %v502 = vsub.f32 %v353, %v499
        %503 = vmatprep.subr.mxu0 0.0
        %504 = vmatpush1.msra.mxu0 0.0
        %505 = vmatprep.subr.mxu0 0.0
        %506 = vmatpush1.msra.mxu0 0.0
        %507 = vmatprep.subr.mxu0 0.0
        %508 = vmatpush1.msra.mxu0 0.0
        %509 = vmatprep.subr.mxu0 0.0
        %510 = vmatpush1.msra.mxu0 0.0
        %511 = vmatprep.subr.mxu0 0.0
        %512 = vmatpush1.msra.mxu0 0.0
        %513 = vmatprep.subr.mxu0 0.0
        %514 = vmatpush1.msra.mxu0 0.0
        %515 = vmatprep.subr.mxu0 0.0
        %516 = vmatpush1.msra.mxu0 0.0
        %517 = vmatprep.subr.mxu0 0.0
        %518 = vmatpush1.msra.mxu0 0.0
        %519 = vmatprep.subr.mxu0 0.0
        %520 = vmatpush1.msra.mxu0 0.0
        %521 = vmatprep.subr.mxu0 0.0
        %522 = vmatpush1.msra.mxu0 0.0
        %523 = vmatprep.subr.mxu0 0.0
        %524 = vmatpush1.msra.mxu0 0.0
        %525 = vmatprep.subr.mxu0 0.0
        %526 = vmatpush1.msra.mxu0 0.0
        %527 = vmatprep.subr.mxu0 0.0
        %528 = vmatpush1.msra.mxu0 0.0
        %529 = vmatprep.subr.mxu0 0.0
        %530 = vmatpush1.msra.mxu0 0.0
        %531 = vmatprep.subr.mxu0 0.0
        %532 = vmatpush1.msra.mxu0 0.0
        %533 = vmatprep.subr.mxu0 0.0
        %534 = vmatpush1.msra.mxu0 %v502
        %535 = vmatprep.subr.mxu0 0.0
        %536 = vmatpush2.msra.mxu0 0.0
        %537 = vmatprep.subr.mxu0 0.0
        %538 = vmatpush2.msra.mxu0 0.0
        %539 = vmatprep.subr.mxu0 0.0
        %540 = vmatpush2.msra.mxu0 0.0
        %541 = vmatprep.subr.mxu0 0.0
        %542 = vmatpush2.msra.mxu0 0.0
        %543 = vmatprep.subr.mxu0 0.0
        %544 = vmatpush2.msra.mxu0 0.0
        %545 = vmatprep.subr.mxu0 0.0
        %546 = vmatpush2.msra.mxu0 0.0
        %547 = vmatprep.subr.mxu0 0.0
        %548 = vmatpush2.msra.mxu0 0.0
        %549 = vmatprep.subr.mxu0 0.0
        %550 = vmatpush2.msra.mxu0 0.0
        %551 = vmatprep.subr.mxu0 0.0
        %552 = vmatpush2.msra.mxu0 0.0
        %553 = vmatprep.subr.mxu0 0.0
        %554 = vmatpush2.msra.mxu0 0.0
        %555 = vmatprep.subr.mxu0 0.0
        %556 = vmatpush2.msra.mxu0 0.0
        %557 = vmatprep.subr.mxu0 0.0
        %558 = vmatpush2.msra.mxu0 0.0
        %559 = vmatprep.subr.mxu0 0.0
        %560 = vmatpush2.msra.mxu0 0.0
        %561 = vmatprep.subr.mxu0 0.0
        %562 = vmatpush2.msra.mxu0 0.0
        %563 = vmatprep.subr.mxu0 0.0
        %564 = vmatpush2.msra.mxu0 0.0
        %565 = vmatprep.subr.mxu0 0.0
        %566 = vmatpush2.msra.mxu0 0.0
        %567 = vmatprep.mubr.f32.mxu0 0.0
        %568 = vmatmul.mubr.f32.gmra.mxu0 %v356
        %v569 = vpop.f32.mrf.mxu0
        %v570 = vadd.f32 0.0, %v569
        %v571 = vpop.f32.mrf.mxu0
        %572 = vdwg.mxu0
        %v573 = vadd.f32 %v428, %v570
        %574 = vmatprep.subr.mxu0 0.0
        %575 = vmatpush1.msra.mxu0 0.0
        %576 = vmatprep.subr.mxu0 0.0
        %577 = vmatpush1.msra.mxu0 0.0
        %578 = vmatprep.subr.mxu0 0.0
        %579 = vmatpush1.msra.mxu0 0.0
        %580 = vmatprep.subr.mxu0 0.0
        %581 = vmatpush1.msra.mxu0 0.0
        %582 = vmatprep.subr.mxu0 0.0
        %583 = vmatpush1.msra.mxu0 0.0
        %584 = vmatprep.subr.mxu0 0.0
        %585 = vmatpush1.msra.mxu0 0.0
        %586 = vmatprep.subr.mxu0 0.0
        %587 = vmatpush1.msra.mxu0 0.0
        %588 = vmatprep.subr.mxu0 0.0
        %589 = vmatpush1.msra.mxu0 0.0
        %590 = vmatprep.subr.mxu0 0.0
        %591 = vmatpush1.msra.mxu0 0.0
        %592 = vmatprep.subr.mxu0 0.0
        %593 = vmatpush1.msra.mxu0 0.0
        %594 = vmatprep.subr.mxu0 0.0
        %595 = vmatpush1.msra.mxu0 0.0
        %596 = vmatprep.subr.mxu0 0.0
        %597 = vmatpush1.msra.mxu0 0.0
        %598 = vmatprep.subr.mxu0 0.0
        %599 = vmatpush1.msra.mxu0 0.0
        %600 = vmatprep.subr.mxu0 0.0
        %601 = vmatpush1.msra.mxu0 0.0
        %602 = vmatprep.subr.mxu0 0.0
        %603 = vmatpush1.msra.mxu0 0.0
        %604 = vmatprep.subr.mxu0 0.0
        %605 = vmatpush1.msra.mxu0 %v570
        %606 = vmatprep.subr.mxu0 0.0
        %607 = vmatpush2.msra.mxu0 0.0
        %608 = vmatprep.subr.mxu0 0.0
        %609 = vmatpush2.msra.mxu0 0.0
        %610 = vmatprep.subr.mxu0 0.0
        %611 = vmatpush2.msra.mxu0 0.0
        %612 = vmatprep.subr.mxu0 0.0
        %613 = vmatpush2.msra.mxu0 0.0
        %614 = vmatprep.subr.mxu0 0.0
        %615 = vmatpush2.msra.mxu0 0.0
        %616 = vmatprep.subr.mxu0 0.0
        %617 = vmatpush2.msra.mxu0 0.0
        %618 = vmatprep.subr.mxu0 0.0
        %619 = vmatpush2.msra.mxu0 0.0
        %620 = vmatprep.subr.mxu0 0.0
        %621 = vmatpush2.msra.mxu0 0.0
        %622 = vmatprep.subr.mxu0 0.0
        %623 = vmatpush2.msra.mxu0 0.0
        %624 = vmatprep.subr.mxu0 0.0
        %625 = vmatpush2.msra.mxu0 0.0
        %626 = vmatprep.subr.mxu0 0.0
        %627 = vmatpush2.msra.mxu0 0.0
        %628 = vmatprep.subr.mxu0 0.0
        %629 = vmatpush2.msra.mxu0 0.0
        %630 = vmatprep.subr.mxu0 0.0
        %631 = vmatpush2.msra.mxu0 0.0
        %632 = vmatprep.subr.mxu0 0.0
        %633 = vmatpush2.msra.mxu0 0.0
        %634 = vmatprep.subr.mxu0 0.0
        %635 = vmatpush2.msra.mxu0 0.0
        %636 = vmatprep.subr.mxu0 0.0
        %637 = vmatpush2.msra.mxu0 0.0
        %638 = vmatprep.mubr.f32.mxu0 0.0
        %639 = vmatmul.mubr.f32.gmra.mxu0 %v430
        %v640 = vpop.f32.mrf.mxu0
        %v641 = vadd.f32 0.0, %v640
        %v642 = vpop.f32.mrf.mxu0
        %643 = vdwg.mxu0
        %v644 = vsub.f32 %v502, %v641
        %645 = vmatprep.subr.mxu0 0.0
        %646 = vmatpush1.msra.mxu0 0.0
        %647 = vmatprep.subr.mxu0 0.0
        %648 = vmatpush1.msra.mxu0 0.0
        %649 = vmatprep.subr.mxu0 0.0
        %650 = vmatpush1.msra.mxu0 0.0
        %651 = vmatprep.subr.mxu0 0.0
        %652 = vmatpush1.msra.mxu0 0.0
        %653 = vmatprep.subr.mxu0 0.0
        %654 = vmatpush1.msra.mxu0 0.0
        %655 = vmatprep.subr.mxu0 0.0
        %656 = vmatpush1.msra.mxu0 0.0
        %657 = vmatprep.subr.mxu0 0.0
        %658 = vmatpush1.msra.mxu0 0.0
        %659 = vmatprep.subr.mxu0 0.0
        %660 = vmatpush1.msra.mxu0 0.0
        %661 = vmatprep.subr.mxu0 0.0
        %662 = vmatpush1.msra.mxu0 0.0
        %663 = vmatprep.subr.mxu0 0.0
        %664 = vmatpush1.msra.mxu0 0.0
        %665 = vmatprep.subr.mxu0 0.0
        %666 = vmatpush1.msra.mxu0 0.0
        %667 = vmatprep.subr.mxu0 0.0
        %668 = vmatpush1.msra.mxu0 0.0
        %669 = vmatprep.subr.mxu0 0.0
        %670 = vmatpush1.msra.mxu0 0.0
        %671 = vmatprep.subr.mxu0 0.0
        %672 = vmatpush1.msra.mxu0 0.0
        %673 = vmatprep.subr.mxu0 0.0
        %674 = vmatpush1.msra.mxu0 0.0
        %675 = vmatprep.subr.mxu0 0.0
        %676 = vmatpush1.msra.mxu0 %v644
        %677 = vmatprep.subr.mxu0 0.0
        %678 = vmatpush2.msra.mxu0 0.0
        %679 = vmatprep.subr.mxu0 0.0
        %680 = vmatpush2.msra.mxu0 0.0
        %681 = vmatprep.subr.mxu0 0.0
        %682 = vmatpush2.msra.mxu0 0.0
        %683 = vmatprep.subr.mxu0 0.0
        %684 = vmatpush2.msra.mxu0 0.0
        %685 = vmatprep.subr.mxu0 0.0
        %686 = vmatpush2.msra.mxu0 0.0
        %687 = vmatprep.subr.mxu0 0.0
        %688 = vmatpush2.msra.mxu0 0.0
        %689 = vmatprep.subr.mxu0 0.0
        %690 = vmatpush2.msra.mxu0 0.0
        %691 = vmatprep.subr.mxu0 0.0
        %692 = vmatpush2.msra.mxu0 0.0
        %693 = vmatprep.subr.mxu0 0.0
        %694 = vmatpush2.msra.mxu0 0.0
        %695 = vmatprep.subr.mxu0 0.0
        %696 = vmatpush2.msra.mxu0 0.0
        %697 = vmatprep.subr.mxu0 0.0
        %698 = vmatpush2.msra.mxu0 0.0
        %699 = vmatprep.subr.mxu0 0.0
        %700 = vmatpush2.msra.mxu0 0.0
        %701 = vmatprep.subr.mxu0 0.0
        %702 = vmatpush2.msra.mxu0 0.0
        %703 = vmatprep.subr.mxu0 0.0
        %704 = vmatpush2.msra.mxu0 0.0
        %705 = vmatprep.subr.mxu0 0.0
        %706 = vmatpush2.msra.mxu0 0.0
        %707 = vmatprep.subr.mxu0 0.0
        %708 = vmatpush2.msra.mxu0 0.0
        %709 = vmatprep.mubr.f32.mxu0 0.0
        %710 = vmatmul.mubr.f32.gmra.mxu0 %v356
        %v711 = vpop.f32.mrf.mxu0
        %v712 = vadd.f32 0.0, %v711
        %v713 = vpop.f32.mrf.mxu0
        %714 = vdwg.mxu0
        %v715 = vadd.f32 %v573, %v712
        %v716 = vld [vmem:[%s333] sm:$0xff]
        %v717 = vld [vmem:[%s333 + $0x8] sm:$0xff]
        %v719 = vsel %vm354, %v716, 0
        %v722 = vsel %vm354, %v717, 0
        %724 = vmatprep.subr.mxu0 0.0
        %725 = vmatpush1.msra.mxu0 0.0
        %726 = vmatprep.subr.mxu0 0.0
        %727 = vmatpush1.msra.mxu0 0.0
        %728 = vmatprep.subr.mxu0 0.0
        %729 = vmatpush1.msra.mxu0 0.0
        %730 = vmatprep.subr.mxu0 0.0
        %731 = vmatpush1.msra.mxu0 0.0
        %732 = vmatprep.subr.mxu0 0.0
        %733 = vmatpush1.msra.mxu0 0.0
        %734 = vmatprep.subr.mxu0 0.0
        %735 = vmatpush1.msra.mxu0 0.0
        %736 = vmatprep.subr.mxu0 0.0
        %737 = vmatpush1.msra.mxu0 0.0
        %738 = vmatprep.subr.mxu0 0.0
        %739 = vmatpush1.msra.mxu0 0.0
        %740 = vmatprep.subr.mxu0 0.0
        %741 = vmatpush1.msra.mxu0 0.0
        %742 = vmatprep.subr.mxu0 0.0
        %743 = vmatpush1.msra.mxu0 0.0
        %744 = vmatprep.subr.mxu0 0.0
        %745 = vmatpush1.msra.mxu0 0.0
        %746 = vmatprep.subr.mxu0 0.0
        %747 = vmatpush1.msra.mxu0 0.0
        %748 = vmatprep.subr.mxu0 0.0
        %749 = vmatpush1.msra.mxu0 0.0
        %750 = vmatprep.subr.mxu0 0.0
        %751 = vmatpush1.msra.mxu0 0.0
        %752 = vmatprep.subr.mxu0 0.0
        %753 = vmatpush1.msra.mxu0 0.0
        %754 = vmatprep.subr.mxu0 0.0
        %755 = vmatpush1.msra.mxu0 %v715
        %756 = vmatprep.subr.mxu0 0.0
        %757 = vmatpush2.msra.mxu0 0.0
        %758 = vmatprep.subr.mxu0 0.0
        %759 = vmatpush2.msra.mxu0 0.0
        %760 = vmatprep.subr.mxu0 0.0
        %761 = vmatpush2.msra.mxu0 0.0
        %762 = vmatprep.subr.mxu0 0.0
        %763 = vmatpush2.msra.mxu0 0.0
        %764 = vmatprep.subr.mxu0 0.0
        %765 = vmatpush2.msra.mxu0 0.0
        %766 = vmatprep.subr.mxu0 0.0
        %767 = vmatpush2.msra.mxu0 0.0
        %768 = vmatprep.subr.mxu0 0.0
        %769 = vmatpush2.msra.mxu0 0.0
        %770 = vmatprep.subr.mxu0 0.0
        %771 = vmatpush2.msra.mxu0 0.0
        %772 = vmatprep.subr.mxu0 0.0
        %773 = vmatpush2.msra.mxu0 0.0
        %774 = vmatprep.subr.mxu0 0.0
        %775 = vmatpush2.msra.mxu0 0.0
        %776 = vmatprep.subr.mxu0 0.0
        %777 = vmatpush2.msra.mxu0 0.0
        %778 = vmatprep.subr.mxu0 0.0
        %779 = vmatpush2.msra.mxu0 0.0
        %780 = vmatprep.subr.mxu0 0.0
        %781 = vmatpush2.msra.mxu0 0.0
        %782 = vmatprep.subr.mxu0 0.0
        %783 = vmatpush2.msra.mxu0 0.0
        %784 = vmatprep.subr.mxu0 0.0
        %785 = vmatpush2.msra.mxu0 0.0
        %786 = vmatprep.subr.mxu0 0.0
        %787 = vmatpush2.msra.mxu0 0.0
        %788 = vmatprep.mubr.f32.mxu0 0.0
        %789 = vmatmul.mubr.f32.gmra.mxu0 %v719
        %v790 = vpop.f32.mrf.mxu0
        %v791 = vadd.f32 0.0, %v790
        %v792 = vpop.f32.mrf.mxu0
        %793 = vmatprep.mubr.f32.mxu0 0.0
        %794 = vmatmul.mubr.f32.gmra.mxu0 %v722
        %v795 = vpop.f32.mrf.mxu0
        %v796 = vadd.f32 0.0, %v795
        %v797 = vpop.f32.mrf.mxu0
        %798 = vdwg.mxu0
        %799 = vst.msk [vmem:[%s350] sm:$0xff] %vm354, %v791
        %800 = vst.msk [vmem:[%s350 + $0x8] sm:$0xff] %vm354, %v796
        %v801 = vld [vmem:[%s278] sm:$0xf]
        %v803 = vsel %vm354, %v801, 0
        %805 = vmatprep.subr.mxu0 0.0
        %806 = vmatpush1.msra.mxu0 0.0
        %807 = vmatprep.subr.mxu0 0.0
        %808 = vmatpush1.msra.mxu0 0.0
        %809 = vmatprep.subr.mxu0 0.0
        %810 = vmatpush1.msra.mxu0 0.0
        %811 = vmatprep.subr.mxu0 0.0
        %812 = vmatpush1.msra.mxu0 0.0
        %813 = vmatprep.subr.mxu0 0.0
        %814 = vmatpush1.msra.mxu0 0.0
        %815 = vmatprep.subr.mxu0 0.0
        %816 = vmatpush1.msra.mxu0 0.0
        %817 = vmatprep.subr.mxu0 0.0
        %818 = vmatpush1.msra.mxu0 0.0
        %819 = vmatprep.subr.mxu0 0.0
        %820 = vmatpush1.msra.mxu0 0.0
        %821 = vmatprep.subr.mxu0 0.0
        %822 = vmatpush1.msra.mxu0 0.0
        %823 = vmatprep.subr.mxu0 0.0
        %824 = vmatpush1.msra.mxu0 0.0
        %825 = vmatprep.subr.mxu0 0.0
        %826 = vmatpush1.msra.mxu0 0.0
        %827 = vmatprep.subr.mxu0 0.0
        %828 = vmatpush1.msra.mxu0 0.0
        %829 = vmatprep.subr.mxu0 0.0
        %830 = vmatpush1.msra.mxu0 0.0
        %831 = vmatprep.subr.mxu0 0.0
        %832 = vmatpush1.msra.mxu0 0.0
        %833 = vmatprep.subr.mxu0 0.0
        %834 = vmatpush1.msra.mxu0 0.0
        %835 = vmatprep.subr.mxu0 0.0
        %836 = vmatpush1.msra.mxu0 %v715
        %837 = vmatprep.subr.mxu0 0.0
        %838 = vmatpush2.msra.mxu0 0.0
        %839 = vmatprep.subr.mxu0 0.0
        %840 = vmatpush2.msra.mxu0 0.0
        %841 = vmatprep.subr.mxu0 0.0
        %842 = vmatpush2.msra.mxu0 0.0
        %843 = vmatprep.subr.mxu0 0.0
        %844 = vmatpush2.msra.mxu0 0.0
        %845 = vmatprep.subr.mxu0 0.0
        %846 = vmatpush2.msra.mxu0 0.0
        %847 = vmatprep.subr.mxu0 0.0
        %848 = vmatpush2.msra.mxu0 0.0
        %849 = vmatprep.subr.mxu0 0.0
        %850 = vmatpush2.msra.mxu0 0.0
        %851 = vmatprep.subr.mxu0 0.0
        %852 = vmatpush2.msra.mxu0 0.0
        %853 = vmatprep.subr.mxu0 0.0
        %854 = vmatpush2.msra.mxu0 0.0
        %855 = vmatprep.subr.mxu0 0.0
        %856 = vmatpush2.msra.mxu0 0.0
        %857 = vmatprep.subr.mxu0 0.0
        %858 = vmatpush2.msra.mxu0 0.0
        %859 = vmatprep.subr.mxu0 0.0
        %860 = vmatpush2.msra.mxu0 0.0
        %861 = vmatprep.subr.mxu0 0.0
        %862 = vmatpush2.msra.mxu0 0.0
        %863 = vmatprep.subr.mxu0 0.0
        %864 = vmatpush2.msra.mxu0 0.0
        %865 = vmatprep.subr.mxu0 0.0
        %866 = vmatpush2.msra.mxu0 0.0
        %867 = vmatprep.subr.mxu0 0.0
        %868 = vmatpush2.msra.mxu0 0.0
        %869 = vmatprep.mubr.f32.mxu0 0.0
        %870 = vmatmul.mubr.f32.gmra.mxu0 %v803
        %v871 = vpop.f32.mrf.mxu0
        %v872 = vadd.f32 0.0, %v871
        %v873 = vpop.f32.mrf.mxu0
        %874 = vdwg.mxu0
        %vm875 = vcmask 60416
        %876 = vst.msk [vmem:[%s328] sm:$0xf] %vm875, %v872
        loop: start=1, step=1, limit=3
        $region45: #{tpu_custom_call.1} parent=39 // loop_pre_header
          _
        $region46: #{tpu_custom_call.1} parent=39 // loop_header
          %s878 = sphi 1, %s882
          %p879 = scmp.ge.s32.totalorder %s878, 3
          %v883 = vphi %v872, %v954
        $region47: #{tpu_custom_call.1} parent=39 // loop_header_branch
          %881 = sbr.rel (%p879) target = $region51
        $region48: #{tpu_custom_call.1} parent=39 // loop_body
          %v885 = vsel %vm354, %v883, 0
          %887 = vmatprep.subr.mxu0 0.0
          %888 = vmatpush1.msra.mxu0 0.0
          %889 = vmatprep.subr.mxu0 0.0
          %890 = vmatpush1.msra.mxu0 0.0
          %891 = vmatprep.subr.mxu0 0.0
          %892 = vmatpush1.msra.mxu0 0.0
          %893 = vmatprep.subr.mxu0 0.0
          %894 = vmatpush1.msra.mxu0 0.0
          %895 = vmatprep.subr.mxu0 0.0
          %896 = vmatpush1.msra.mxu0 0.0
          %897 = vmatprep.subr.mxu0 0.0
          %898 = vmatpush1.msra.mxu0 0.0
          %899 = vmatprep.subr.mxu0 0.0
          %900 = vmatpush1.msra.mxu0 0.0
          %901 = vmatprep.subr.mxu0 0.0
          %902 = vmatpush1.msra.mxu0 0.0
          %903 = vmatprep.subr.mxu0 0.0
          %904 = vmatpush1.msra.mxu0 0.0
          %905 = vmatprep.subr.mxu0 0.0
          %906 = vmatpush1.msra.mxu0 0.0
          %907 = vmatprep.subr.mxu0 0.0
          %908 = vmatpush1.msra.mxu0 0.0
          %909 = vmatprep.subr.mxu0 0.0
          %910 = vmatpush1.msra.mxu0 0.0
          %911 = vmatprep.subr.mxu0 0.0
          %912 = vmatpush1.msra.mxu0 0.0
          %913 = vmatprep.subr.mxu0 0.0
          %914 = vmatpush1.msra.mxu0 0.0
          %915 = vmatprep.subr.mxu0 0.0
          %916 = vmatpush1.msra.mxu0 0.0
          %917 = vmatprep.subr.mxu0 0.0
          %918 = vmatpush1.msra.mxu0 %v712
          %919 = vmatprep.subr.mxu0 0.0
          %920 = vmatpush2.msra.mxu0 0.0
          %921 = vmatprep.subr.mxu0 0.0
          %922 = vmatpush2.msra.mxu0 0.0
          %923 = vmatprep.subr.mxu0 0.0
          %924 = vmatpush2.msra.mxu0 0.0
          %925 = vmatprep.subr.mxu0 0.0
          %926 = vmatpush2.msra.mxu0 0.0
          %927 = vmatprep.subr.mxu0 0.0
          %928 = vmatpush2.msra.mxu0 0.0
          %929 = vmatprep.subr.mxu0 0.0
          %930 = vmatpush2.msra.mxu0 0.0
          %931 = vmatprep.subr.mxu0 0.0
          %932 = vmatpush2.msra.mxu0 0.0
          %933 = vmatprep.subr.mxu0 0.0
          %934 = vmatpush2.msra.mxu0 0.0
          %935 = vmatprep.subr.mxu0 0.0
          %936 = vmatpush2.msra.mxu0 0.0
          %937 = vmatprep.subr.mxu0 0.0
          %938 = vmatpush2.msra.mxu0 0.0
          %939 = vmatprep.subr.mxu0 0.0
          %940 = vmatpush2.msra.mxu0 0.0
          %941 = vmatprep.subr.mxu0 0.0
          %942 = vmatpush2.msra.mxu0 0.0
          %943 = vmatprep.subr.mxu0 0.0
          %944 = vmatpush2.msra.mxu0 0.0
          %945 = vmatprep.subr.mxu0 0.0
          %946 = vmatpush2.msra.mxu0 0.0
          %947 = vmatprep.subr.mxu0 0.0
          %948 = vmatpush2.msra.mxu0 0.0
          %949 = vmatprep.subr.mxu0 0.0
          %950 = vmatpush2.msra.mxu0 0.0
          %951 = vmatprep.mubr.f32.mxu0 0.0
          %952 = vmatmul.mubr.f32.gmra.mxu0 %v885
          %v953 = vpop.f32.mrf.mxu0
          %v954 = vadd.f32 0.0, %v953
          %v955 = vpop.f32.mrf.mxu0
          %956 = vdwg.mxu0
          %s957 = smul.u32 %s878, 4
          %s958 = scalar_lea.vmem %s328, %s957 [#allocation5]
          %959 = vst.msk [vmem:[%s958] sm:$0xf] %vm875, %v954
        $region49: #{tpu_custom_call.1} parent=39 // loop_footer
          %s882 = sadd.s32 1, %s878
        $region50: #{tpu_custom_call.1} parent=39 // loop_footer_branch
          %877 = sbr.rel target = $region46
        $region51: #{tpu_custom_call.1} parent=39 // loop_exit
          _
        %p960 = scmp.lt.s32.totalorder %s24, 1
        %s961 = scalar_select %p960, %s24, 1
        %s962 = smul.addr %s961, 2
        %s963 = smul.addr %s962, 8
        %s964 = scalar_lea.vmem %s5, %s963
        %s965 = sand.u32 %s188, 1
        %s966 = scalar_lea.sflag [#allocation4], %s965
        %s967 = sand.u32 %s188, 1
        %s968 = smul.addr %s967, 12
        %s969 = scalar_lea.vmem [#allocation5], %s968
        // Predicated region
        $region52: #{tpu_custom_call.1} parent=39 // pred_check
          %p970 = pneg %p172
        $region53: #{tpu_custom_call.1} parent=39 // pred_check_branch
          %972 = sbr.rel (%p970) target = $region55
        $region54: #{tpu_custom_call.1} parent=39 // pred_region
          _
        $region55: #{tpu_custom_call.1} parent=39 // pred_fallthru
          _
        // Predicated region
        $region56: #{tpu_custom_call.1} parent=39 // pred_check
          %p973 = pneg %p198
        $region57: #{tpu_custom_call.1} parent=39 // pred_check_branch
          %975 = sbr.rel (%p973) target = $region59
        $region58: #{tpu_custom_call.1} parent=39 // pred_region
          %s977 = ssub.s32 192, 192
          %978 = vsyncadd %s966, %s977
          %s979 = smul.addr %s24, 3
          %s980 = smul.addr %s979, 64
          %s981 = scalar_lea.hbm %s6, %s980
          %s982 = sshll.u32 %s969, 4
          %s983 = int_to_ptr.vmem [resolvable:$true] %s982
          %988 = dma.vmem_to_hbm [thread:$0]  %s983, 192, %s981, %s966, 64, 64, 4
        $region59: #{tpu_custom_call.1} parent=39 // pred_fallthru
          _
      $region40: #{tpu_custom_call.1} parent=5 // pred_fallthru
        _
      %p989 = scmp.le.s32.totalorder 2, %s19
      // Predicated region
      $region60: #{tpu_custom_call.1} parent=5 // pred_check
        %p990 = pneg %p989
      $region61: #{tpu_custom_call.1} parent=5 // pred_check_branch
        %992 = sbr.rel (%p990) target = $region63
      $region62: #{tpu_custom_call.1} parent=5 // pred_region
        %s993 = ssub.s32 %s19, 2
        // Predicated region
        $region64: #{tpu_custom_call.1} parent=62 // pred_check
          %p994 = pneg %p178
        $region65: #{tpu_custom_call.1} parent=62 // pred_check_branch
          %996 = sbr.rel (%p994) target = $region67
        $region66: #{tpu_custom_call.1} parent=62 // pred_region
          %p997 = scmp.lt.s32.totalorder %s25, 1
          %s998 = scalar_select %p997, %s25, 1
          %s999 = smul.addr %s998, 2
          %s1000 = smul.addr %s999, 8
          %s1001 = scalar_lea.vmem %s5, %s1000
        $region67: #{tpu_custom_call.1} parent=62 // pred_fallthru
          _
        // Predicated region
        $region68: #{tpu_custom_call.1} parent=62 // pred_check
          %p1002 = pneg %p204
        $region69: #{tpu_custom_call.1} parent=62 // pred_check_branch
          %1004 = sbr.rel (%p1002) target = $region71
        $region70: #{tpu_custom_call.1} parent=62 // pred_region
          %s1005 = sand.u32 %s189, 1
          %s1006 = scalar_lea.sflag [#allocation4], %s1005
          %s1007 = sand.u32 %s189, 1
          %s1008 = smul.addr %s1007, 12
          %s1009 = scalar_lea.vmem [#allocation5], %s1008
          %1010 = dma.done %s1006, 192
        $region71: #{tpu_custom_call.1} parent=62 // pred_fallthru
          _
      $region63: #{tpu_custom_call.1} parent=5 // pred_fallthru
        _
    $region6: #{tpu_custom_call.1} parent=1 // loop_footer
      %s23 = sadd.s32 1, %s19
    $region7: #{tpu_custom_call.1} parent=1 // loop_footer_branch
      %18 = sbr.rel target = $region3
    $region8: #{tpu_custom_call.1} parent=1 // loop_exit
      _
    %1011 = vsyncpa [#allocation3], 1
    %s1012 = scalar_lea.sflag [#allocation3], 1
    %1013 = vsyncpa %s1012, 1
    %1014 = vsyncpa [#allocation4], 1
    %s1015 = scalar_lea.sflag [#allocation4], 1
    %1016 = vsyncpa %s1015, 1

</llo_original>
